<compile_context>
chip_gen: v7x
topology: tpu7x:2x2x1
jax: 0.10.0
libtpu: 0.0.40
codegen_flags: <defaults>
</compile_context>

<pallas_src>
import functools

import jax
import jax.numpy as jnp
from jax.experimental import pallas as pl
from jax.experimental.pallas import tpu as pltpu


def _round_up(x, m):
    return (x + m - 1) // m * m


def _crelu_kernel(p_ref, w_ref, b_ref, o_ref):
    # p_ref: (K, TM)       im2col patches, M on the 128-lane axis
    # w_ref: (2*Cout, K)   stacked [W_scaled; -W_scaled] (BN scale folded in)
    # b_ref: (2*Cout, 1)   stacked [bias; -bias], f32
    # o_ref: (2*Cout, TM)  relu6(stacked GEMM) -> one contiguous slab store
    y = jnp.dot(w_ref[...], p_ref[...],
                preferred_element_type=jnp.float32)         # (2*Cout, TM) f32
    y = y + b_ref[...]                                       # lane-broadcast bias
    o_ref[...] = jnp.clip(y, 0.0, 6.0).astype(o_ref.dtype)


def _im2col_t_nchw(x_nchw, kh, kw, stride, padding):
    """Transposed im2col from NCHW. Returns (KH*KW*Cin, N*OH*OW) and (OH, OW).

    Only transposes the (small) padded input to channel-first once; the
    stacked tap intermediate is built directly in (K, M) order, so there is no
    transpose over the KH*KW-times-larger array.
    """
    n, cin, h, w = x_nchw.shape
    oh = (h + 2 * padding - kh) // stride + 1
    ow = (w + 2 * padding - kw) // stride + 1
    x_pad = jnp.pad(x_nchw, ((0, 0), (0, 0),
                             (padding, padding), (padding, padding)))
    x_cf = jnp.transpose(x_pad, (1, 0, 2, 3))        # (Cin, N, Hp, Wp)
    cols = []
    for i in range(kh):
        for j in range(kw):
            cols.append(x_cf[:, :, i:i + (oh - 1) * stride + 1:stride,
                                   j:j + (ow - 1) * stride + 1:stride])
    # K ordering: k = (kh_i*KW + kw_j)*Cin + c  -- matches the weight reshape.
    pt = jnp.stack(cols, axis=0)                     # (KH*KW, Cin, N, OH, OW)
    return pt.reshape(kh * kw * cin, n * oh * ow), (oh, ow)


@functools.partial(jax.jit,
                   static_argnames=("stride", "padding", "compute_dtype", "tm"))
def conv2d_crelu(x_nchw, conv_w, conv_b, bn_gamma, bn_beta, bn_mean, bn_var,
                 *, stride, padding, eps=1e-5,
                 compute_dtype=jnp.bfloat16, tm=4096):
    """Forward pass matching Conv2dCReLU (BatchNorm in eval mode)."""
    n, cin, h, w = x_nchw.shape
    cout, _, kh, kw = conv_w.shape
    k = kh * kw * cin
    cout2 = 2 * cout

    # Fold BN (eval) into the weight (scale) and a per-channel bias; stack
    # [W; -W] and [b; -b] so one GEMM produces the concatenated channels in
    # torch.cat([x, -x], dim=1) order.
    bn_scale = (bn_gamma / jnp.sqrt(bn_var + eps)).astype(jnp.float32)      # (Cout,)
    fused_bias = ((conv_b - bn_mean) * bn_scale + bn_beta).astype(jnp.float32)

    # (Cout, Cin, KH, KW) -> (Cout, KH, KW, Cin) -> (Cout, K), scale folded in.
    w_t = jnp.transpose(conv_w, (0, 2, 3, 1)).reshape(cout, k)
    w_scaled = w_t.astype(jnp.float32) * bn_scale[:, None]
    w2 = jnp.concatenate([w_scaled, -w_scaled], axis=0).astype(compute_dtype)  # (2Cout, K)
    b2 = jnp.concatenate([fused_bias, -fused_bias], axis=0).reshape(cout2, 1)  # (2Cout, 1) f32

    # Transposed im2col: (K, M), M = N*OH*OW on the fast axis.
    patches_t, (oh, ow) = _im2col_t_nchw(x_nchw, kh, kw, stride, padding)
    patches_t = patches_t.astype(compute_dtype)
    m = n * oh * ow

    # ---- Tile M (lane axis) ----------------------------------------------
    in_bytes = jnp.dtype(compute_dtype).itemsize
    out_bytes = in_bytes
    # Conservative VMEM budget (fits the v7x 32 MiB scoped default with room
    # to spare on v5e/v6e).  Double-buffered patch + output tiles per column,
    # plus resident stacked weight / bias.
    budget = 24 * 1024 * 1024
    resident = cout2 * k * in_bytes + cout2 * 4
    per_col = 2 * k * in_bytes + 2 * cout2 * out_bytes
    tm_vmem_cap = max(128, ((budget - resident) // per_col) // 128 * 128)

    m_ceil = _round_up(m, 128)
    if m_ceil > 128:
        # Force >=2 tiles so the "parallel" grid axis can feed both v7x cores.
        split_cap = _round_up(pl.cdiv(m, 2), 128)
    else:
        split_cap = 128
    tm_eff = max(128, min(tm, tm_vmem_cap, split_cap, m_ceil))

    grid = (pl.cdiv(m, tm_eff),)   # ragged last tile handled by Pallas masking

    out_flat = pl.pallas_call(
        _crelu_kernel,
        out_shape=jax.ShapeDtypeStruct((cout2, m), compute_dtype),
        grid_spec=pltpu.PrefetchScalarGridSpec(
            num_scalar_prefetch=0,
            grid=grid,
            in_specs=[
                pl.BlockSpec((k, tm_eff), lambda i: (0, i)),      # patch tile
                pl.BlockSpec((cout2, k), lambda i: (0, 0)),       # weight (resident)
                pl.BlockSpec((cout2, 1), lambda i: (0, 0)),       # bias   (resident)
            ],
            out_specs=pl.BlockSpec((cout2, tm_eff), lambda i: (0, i)),
        ),
        compiler_params=pltpu.CompilerParams(
            # M-tiles are independent -> shard across v7x's 2 TensorCores.
            dimension_semantics=("parallel",),
            vmem_limit_bytes=32 * 1024 * 1024),
    )(patches_t, w2, b2)

    # (2*Cout, M) -> NCHW.  Channel order already matches cat([y, -y], dim=1).
    out = out_flat.reshape(cout2, n, oh, ow)
    return jnp.transpose(out, (1, 0, 2, 3))


def _reference(x_nchw, conv_w, conv_b, bn_gamma, bn_beta, bn_mean, bn_var,
               *, stride, padding, eps=1e-5):
    y = jax.lax.conv_general_dilated(
        x_nchw, conv_w, window_strides=(stride, stride),
        padding=[(padding, padding), (padding, padding)],
        dimension_numbers=("NCHW", "OIHW", "NCHW"))
    y = y + conv_b[None, :, None, None]
    scale = bn_gamma / jnp.sqrt(bn_var + eps)
    y = (y - bn_mean[None, :, None, None]) * scale[None, :, None, None] \
        + bn_beta[None, :, None, None]
    out = jnp.concatenate([y, -y], axis=1)
    return jnp.clip(out, 0.0, 6.0)


if __name__ == "__main__":
    # Module hyper-params (small, consistent with FaceBoxes usage).
    in_channels, out_channels = 4, 8
    kernel_size, stride, padding = 3, 2, 1

    key = jax.random.PRNGKey(0)
    kx, kx2, kw_, kb, kg, kbeta, km, kv = jax.random.split(key, 8)

    conv_w = 0.1 * jax.random.normal(
        kw_, (out_channels, in_channels, kernel_size, kernel_size), jnp.float32)
    conv_b = 0.1 * jax.random.normal(kb, (out_channels,), jnp.float32)
    # BatchNorm2d parameters (eval-mode / running statistics).
    bn_gamma = 1.0 + 0.1 * jax.random.normal(kg, (out_channels,), jnp.float32)
    bn_beta = 0.1 * jax.random.normal(kbeta, (out_channels,), jnp.float32)
    bn_mean = 0.1 * jax.random.normal(km, (out_channels,), jnp.float32)
    bn_var = jnp.abs(1.0 + 0.1 * jax.random.normal(kv, (out_channels,), jnp.float32))

    # --- Config A: 16x16 input (M = 128, single aligned tile). ---
    N, H, W = 2, 16, 16
    x = jax.random.normal(kx, (N, in_channels, H, W), dtype=jnp.float32)
    ref = _reference(x, conv_w, conv_b, bn_gamma, bn_beta, bn_mean, bn_var,
                     stride=stride, padding=padding)

    out_f32 = conv2d_crelu(x, conv_w, conv_b, bn_gamma, bn_beta, bn_mean, bn_var,
                           stride=stride, padding=padding,
                           compute_dtype=jnp.float32)
    out_f32 = jax.block_until_ready(out_f32)
    assert out_f32.shape == ref.shape == (N, 2 * out_channels, H // stride, W // stride)
    assert jnp.allclose(out_f32, ref, atol=1e-4, rtol=1e-4), \
        float(jnp.max(jnp.abs(out_f32 - ref)))

    # bf16-streamed path (the performance configuration): looser tolerance.
    out_bf16 = conv2d_crelu(x, conv_w, conv_b, bn_gamma, bn_beta, bn_mean, bn_var,
                            stride=stride, padding=padding,
                            compute_dtype=jnp.bfloat16)
    out_bf16 = jax.block_until_ready(out_bf16)
    assert jnp.allclose(out_bf16.astype(jnp.float32), ref, atol=5e-2, rtol=5e-2), \
        float(jnp.max(jnp.abs(out_bf16.astype(jnp.float32) - ref)))

    # --- Config B: 10x10 input (M = 50, exercises the ragged/masked tile). ---
    H2, W2 = 10, 10
    x2 = jax.random.normal(kx2, (N, in_channels, H2, W2), dtype=jnp.float32)
    ref2 = _reference(x2, conv_w, conv_b, bn_gamma, bn_beta, bn_mean, bn_var,
                      stride=stride, padding=padding)
    out2 = conv2d_crelu(x2, conv_w, conv_b, bn_gamma, bn_beta, bn_mean, bn_var,
                        stride=stride, padding=padding,
                        compute_dtype=jnp.float32)
    out2 = jax.block_until_ready(out2)
    assert out2.shape == ref2.shape
    assert jnp.allclose(out2, ref2, atol=1e-4, rtol=1e-4), \
        float(jnp.max(jnp.abs(out2 - ref2)))

    print("KERNEL_OK")
</pallas_src>

<mosaic_0001>
module attributes {stable_mosaic.version = 11 : i64} {
  func.func @_crelu_kernel(%arg0: i32, %arg1: memref<36x128xf32, #tpu.memory_space<vmem>>, %arg2: memref<16x36xf32, #tpu.memory_space<vmem>>, %arg3: memref<16x1xf32, #tpu.memory_space<vmem>>, %arg4: memref<16x128xf32, #tpu.memory_space<vmem>>) attributes {dimension_semantics = [#tpu.dimension_semantics<parallel>], iteration_bounds = array<i64: 1>, scalar_prefetch = 0 : i64, scratch_operands = 0 : i64, tpu.core_type = #tpu.core_type<tc>, window_params = [{transform_indices = @transform_0, window_bounds = array<i64: 36, 128>}, {pipeline_mode = #tpu.pipeline_mode<synchronous>, transform_indices = @transform_1, window_bounds = array<i64: 16, 36>}, {pipeline_mode = #tpu.pipeline_mode<synchronous>, transform_indices = @transform_2, window_bounds = array<i64: 16, 1>}, {transform_indices = @transform_3, window_bounds = array<i64: 16, 128>}]} {
    %c0 = arith.constant 0 : index
    %c0_0 = arith.constant 0 : index
    %0 = vector.load %arg2[%c0, %c0_0] : memref<16x36xf32, #tpu.memory_space<vmem>>, vector<16x36xf32>
    %c0_1 = arith.constant 0 : index
    %c0_2 = arith.constant 0 : index
    %1 = vector.load %arg1[%c0_1, %c0_2] : memref<36x128xf32, #tpu.memory_space<vmem>>, vector<36x128xf32>
    %cst = arith.constant dense<0.000000e+00> : vector<16x128xf32>
    %2 = tpu.matmul %0, %1, %cst {dimension_numbers = #tpu.dot_dimension_numbers<[1], [0], [0], [1], [0, 0, 1, 1], [], []>} : vector<16x36xf32>, vector<36x128xf32>, vector<16x128xf32> -> vector<16x128xf32>
    %c0_3 = arith.constant 0 : index
    %c0_4 = arith.constant 0 : index
    %3 = vector.load %arg3[%c0_3, %c0_4] : memref<16x1xf32, #tpu.memory_space<vmem>>, vector<16x1xf32>
    %4 = vector.broadcast %3 : vector<16x1xf32> to vector<16x128xf32>
    %5 = arith.addf %2, %4 : vector<16x128xf32>
    %cst_5 = arith.constant 0.000000e+00 : f32
    %cst_6 = arith.constant 6.000000e+00 : f32
    %6 = vector.broadcast %cst_5 : f32 to vector<16x128xf32>
    %7 = arith.maximumf %6, %5 : vector<16x128xf32>
    %8 = vector.broadcast %cst_6 : f32 to vector<16x128xf32>
    %9 = arith.minimumf %8, %7 : vector<16x128xf32>
    %c0_7 = arith.constant 0 : index
    %c0_8 = arith.constant 0 : index
    %10 = vector.load %arg4[%c0_7, %c0_8] : memref<16x128xf32, #tpu.memory_space<vmem>>, vector<16x128xf32>
    tpu.vector_store %arg4[%c0_7, %c0_8], %9 {strides = array<i32>} : memref<16x128xf32, #tpu.memory_space<vmem>>, vector<16x128xf32>,
    return
  }
  func.func @transform_0(%arg0: i32) -> (i32, i32) {
    %c0_i32 = arith.constant 0 : i32
    %c0_i32_0 = arith.constant 0 : i32
    return %c0_i32, %arg0 : i32, i32
  }
  func.func @transform_1(%arg0: i32) -> (i32, i32) {
    %c0_i32 = arith.constant 0 : i32
    %c0_i32_0 = arith.constant 0 : i32
    %c0_i32_1 = arith.constant 0 : i32
    return %c0_i32, %c0_i32_0 : i32, i32
  }
  func.func @transform_2(%arg0: i32) -> (i32, i32) {
    %c0_i32 = arith.constant 0 : i32
    %c0_i32_0 = arith.constant 0 : i32
    %c0_i32_1 = arith.constant 0 : i32
    return %c0_i32, %c0_i32_0 : i32, i32
  }
  func.func @transform_3(%arg0: i32) -> (i32, i32) {
    %c0_i32 = arith.constant 0 : i32
    %c0_i32_0 = arith.constant 0 : i32
    return %c0_i32, %arg0 : i32, i32
  }
}

</mosaic_0001>

<llo_original>
// kernel: conv2d_crelu.1
$region0: #{conv2d_crelu.1}
  #allocation0 [shape = 'u32[]', space=smem, size = 0x4, offset = 0x4, fixed_abs, tag = 'smem constant byte address 0x4 - core index']
  #allocation1 [shape = 'u32[144,128]{1,0:T(1,128)}', space=vmem, size = 0x12000, scoped, tag = 'internal scratch']
  %s0 = inlined_call_operand.vmem [shape: f32[36,128], index: 0, kind: input, shape index: {}]
  %s1 = inlined_call_operand.vmem [shape: f32[16,36], index: 1, kind: input, shape index: {}]
  %s2 = inlined_call_operand.vmem [shape: f32[16,1], index: 2, kind: input, shape index: {}]
  %s3 = inlined_call_operand.vmem [shape: f32[16,128], index: 3, kind: output, shape index: {}]
  %s4 = sld [smem:[#allocation0]]
  $region22: #{conv2d_crelu.1} parent=0
    _
  %s6 = ssub.s32 1, %s4
  %s7 = scalar_select 0, %s6, %s4
  // Predicated region
  $region2: #{conv2d_crelu.1} parent=0 // pred_check
    _
  $region3: #{conv2d_crelu.1} parent=0 // pred_check_branch
    %9 = sbr.rel (0) target = $region5
  $region4: #{conv2d_crelu.1} parent=0 // pred_region
    _
  $region5: #{conv2d_crelu.1} parent=0 // pred_fallthru
    _
  // Predicated region
  $region6: #{conv2d_crelu.1} parent=0 // pred_check
    _
  $region7: #{conv2d_crelu.1} parent=0 // pred_check_branch
    %11 = sbr.rel (0) target = $region9
  $region8: #{conv2d_crelu.1} parent=0 // pred_region
    _
  $region9: #{conv2d_crelu.1} parent=0 // pred_fallthru
    _
  // Predicated region
  $region10: #{conv2d_crelu.1} parent=0 // pred_check
    _
  $region11: #{conv2d_crelu.1} parent=0 // pred_check_branch
    %13 = sbr.rel (0) target = $region13
  $region12: #{conv2d_crelu.1} parent=0 // pred_region
    _
  $region13: #{conv2d_crelu.1} parent=0 // pred_fallthru
    _
  %v14 = vld [vmem:[%s1] sm:$0xff]
  %v15 = vld [vmem:[%s1 + $0x8] sm:$0xff]
  %v16 = vld [vmem:[%s0] sm:$0xff]
  %v17 = vld [vmem:[%s0 + $0x8] sm:$0xff]
  %v18 = vld [vmem:[%s0 + $0x10] sm:$0xff]
  %v19 = vld [vmem:[%s0 + $0x18] sm:$0xff]
  %v20 = vld [vmem:[%s0 + $0x20] sm:$0xf]
  %v21 = vld [vmem:[%s2] sm:$0xff]
  %v22 = vld [vmem:[%s2 + $0x8] sm:$0xff]
  %24 = vset.pattern.permute.xlu0 0
  %25 = vperm.xlu0 %24, %v21
  %v26 = vpop.permute.xlu0 %25
  %29 = vset.pattern.permute.xlu0 0
  %30 = vperm.xlu0 %29, %v22
  %v31 = vpop.permute.xlu0 %30
  %vm33 = vcmask 293888
  %v35 = vsel %vm33, %v14, 0
  %v38 = vsel %vm33, %v15, 0
  %vm40 = vcmask 1043456
  %v42 = vsel %vm40, %v20, 0
  %44 = vmatprep.subr.mxu0 0.0
  %45 = vmatpush1.msra.mxu0 %v16
  %46 = vmatprep.subr.mxu0 0.0
  %47 = vmatpush1.msra.mxu0 %v17
  %48 = vmatprep.subr.mxu0 0.0
  %49 = vmatpush1.msra.mxu0 %v18
  %50 = vmatprep.subr.mxu0 0.0
  %51 = vmatpush1.msra.mxu0 %v19
  %52 = vmatprep.subr.mxu0 0.0
  %53 = vmatpush1.msra.mxu0 %v42
  %54 = vmatprep.subr.mxu0 0.0
  %55 = vmatpush1.msra.mxu0 0.0
  %56 = vmatprep.subr.mxu0 0.0
  %57 = vmatpush1.msra.mxu0 0.0
  %58 = vmatprep.subr.mxu0 0.0
  %59 = vmatpush1.msra.mxu0 0.0
  %60 = vmatprep.subr.mxu0 0.0
  %61 = vmatpush1.msra.mxu0 0.0
  %62 = vmatprep.subr.mxu0 0.0
  %63 = vmatpush1.msra.mxu0 0.0
  %64 = vmatprep.subr.mxu0 0.0
  %65 = vmatpush1.msra.mxu0 0.0
  %66 = vmatprep.subr.mxu0 0.0
  %67 = vmatpush1.msra.mxu0 0.0
  %68 = vmatprep.subr.mxu0 0.0
  %69 = vmatpush1.msra.mxu0 0.0
  %70 = vmatprep.subr.mxu0 0.0
  %71 = vmatpush1.msra.mxu0 0.0
  %72 = vmatprep.subr.mxu0 0.0
  %73 = vmatpush1.msra.mxu0 0.0
  %74 = vmatprep.subr.mxu0 0.0
  %75 = vmatpush1.msra.mxu0 0.0
  %76 = vmatprep.subr.mxu0 0.0
  %77 = vmatpush1.msra.mxu0 0.0
  %78 = vmatprep.subr.mxu0 0.0
  %79 = vmatpush1.msra.mxu0 0.0
  %80 = vmatprep.subr.mxu0 0.0
  %81 = vmatpush1.msra.mxu0 0.0
  %82 = vmatprep.subr.mxu0 0.0
  %83 = vmatpush1.msra.mxu0 0.0
  %84 = vmatprep.subr.mxu0 0.0
  %85 = vmatpush1.msra.mxu0 0.0
  %86 = vmatprep.subr.mxu0 0.0
  %87 = vmatpush1.msra.mxu0 0.0
  %88 = vmatprep.subr.mxu0 0.0
  %89 = vmatpush1.msra.mxu0 0.0
  %90 = vmatprep.subr.mxu0 0.0
  %91 = vmatpush1.msra.mxu0 0.0
  %92 = vmatprep.subr.mxu0 0.0
  %93 = vmatpush1.msra.mxu0 0.0
  %94 = vmatprep.subr.mxu0 0.0
  %95 = vmatpush1.msra.mxu0 0.0
  %96 = vmatprep.subr.mxu0 0.0
  %97 = vmatpush1.msra.mxu0 0.0
  %98 = vmatprep.subr.mxu0 0.0
  %99 = vmatpush1.msra.mxu0 0.0
  %100 = vmatprep.subr.mxu0 0.0
  %101 = vmatpush1.msra.mxu0 0.0
  %102 = vmatprep.subr.mxu0 0.0
  %103 = vmatpush1.msra.mxu0 0.0
  %104 = vmatprep.subr.mxu0 0.0
  %105 = vmatpush1.msra.mxu0 0.0
  %106 = vmatprep.subr.mxu0 0.0
  %107 = vmatpush1.msra.mxu0 0.0
  %108 = vmatprep.mubr.f32.mxu0 0.0
  %109 = vmatmul.mubr.f32.gmra.mrb[0].mxu0 %v35
  %v110 = vpop.f32.mrb[0].mxu0
  %v111 = vadd.f32 %v26, %v110
  %v112 = vpop.f32.mrb[0].mxu0
  %113 = vmatprep.mubr.f32.mxu0 0.0
  %114 = vmatmul.mubr.f32.gmra.mrb[0].mxu0 %v38
  %v115 = vpop.f32.mrb[0].mxu0
  %v116 = vadd.f32 %v31, %v115
  %v117 = vpop.f32.mrb[0].mxu0
  %118 = vdwg.mxu0
  %v119 = vmax.f32 %v111, 0.0
  %v120 = vmax.f32 %v116, 0.0
  %v121 = vmin.f32 %v119, 6.0
  %v122 = vmin.f32 %v120, 6.0
  %123 = vst [vmem:[%s3] sm:$0xff] %v121
  %124 = vst [vmem:[%s3 + $0x8] sm:$0xff] %v122
  // Predicated region
  $region14: #{conv2d_crelu.1} parent=0 // pred_check
    _
  $region15: #{conv2d_crelu.1} parent=0 // pred_check_branch
    %126 = sbr.rel (0) target = $region17
  $region16: #{conv2d_crelu.1} parent=0 // pred_region
    _
  $region17: #{conv2d_crelu.1} parent=0 // pred_fallthru
    _
  // Predicated region
  $region18: #{conv2d_crelu.1} parent=0 // pred_check
    _
  $region19: #{conv2d_crelu.1} parent=0 // pred_check_branch
    %128 = sbr.rel (0) target = $region21
  $region20: #{conv2d_crelu.1} parent=0 // pred_region
    _
  $region21: #{conv2d_crelu.1} parent=0 // pred_fallthru
    _

</llo_original>
